<compile_context>
chip_gen: v5e
topology: v5e:2x2
jax: 0.10.0
libtpu: 0.0.40
codegen_flags: <defaults>
</compile_context>

<pallas_src>
import functools

import jax
import jax.numpy as jnp
from jax.experimental import pallas as pl
from jax.experimental.pallas import tpu as pltpu


_MAX_TILE = 4096


def _round_up(x, m):
    return ((x + m - 1) // m) * m


def _pick_tile(batch, max_tile):
    """Power-of-two batch tile aiming for ~4-8 grid steps, capped at max_tile."""
    if batch <= 16:
        # Single block covering the whole batch; a block dim equal to the full
        # array dim is always legal, even if not a multiple of 8.
        return batch
    tile = 16
    while tile < max_tile and tile * 8 <= batch:
        tile *= 2
    return tile


def _mlp_kernel(x_ref, w1_ref, b1_ref, w2_ref, b2_ref, w3_ref, b3_ref, o_ref):
    """Fused 3-layer MLP for one batch tile.

    All bf16 casts happen here on the VPU (free; the kernel is DMA-bound).
    Matmuls accumulate in f32 on the MXU; bias add + ReLU stay in f32 vregs.
    """
    bf16 = jnp.bfloat16
    x = x_ref[...].astype(bf16)

    h1 = jnp.dot(x, w1_ref[...].astype(bf16), preferred_element_type=jnp.float32)
    h1 = jnp.maximum(h1 + b1_ref[...].astype(jnp.float32), 0.0)

    h2 = jnp.dot(h1.astype(bf16), w2_ref[...].astype(bf16),
                 preferred_element_type=jnp.float32)
    h2 = jnp.maximum(h2 + b2_ref[...].astype(jnp.float32), 0.0)

    out = jnp.dot(h2.astype(bf16), w3_ref[...].astype(bf16),
                  preferred_element_type=jnp.float32)
    out = out + b3_ref[...].astype(jnp.float32)
    o_ref[...] = out.astype(o_ref.dtype)


@functools.partial(jax.jit, static_argnames=("batch_tile", "out_dtype"))
def _forward_impl(x, w1, b1, w2, b2, w3, b3, *, batch_tile, out_dtype):
    B, in_f = x.shape
    out_f = w3.shape[1]

    grid = (pl.cdiv(B, batch_tile),)  # ragged last block handled by Pallas

    # Block-invariant specs: weights/biases are DMA'd into VMEM exactly once.
    invariant = lambda a: pl.BlockSpec(a.shape, lambda i: (0, 0))

    return pl.pallas_call(
        _mlp_kernel,
        out_shape=jax.ShapeDtypeStruct((B, out_f), out_dtype),
        grid_spec=pltpu.PrefetchScalarGridSpec(
            num_scalar_prefetch=0,
            grid=grid,
            in_specs=[
                pl.BlockSpec((batch_tile, in_f), lambda i: (i, 0)),  # x tile
                invariant(w1), invariant(b1),
                invariant(w2), invariant(b2),
                invariant(w3), invariant(b3),
            ],
            out_specs=pl.BlockSpec((batch_tile, out_f), lambda i: (i, 0)),
        ),
        compiler_params=pltpu.CompilerParams(
            dimension_semantics=("parallel",),  # batch grid shards across TCs (v7x)
        ),
    )(x, w1, b1, w2, b2, w3, b3)


def sign_language_nn_forward(x, params, *, max_batch_tile=_MAX_TILE,
                             out_dtype=jnp.bfloat16):
    """Forward pass of SignLanguageNN.

    x:      (B, input_size) float32 (any float dtype accepted; cast in-kernel)
    params: dict with w1 (in,H), b1 (1,H), w2 (H,H), b2 (1,H),
            w3 (H,out), b3 (1,out)   (pre-transposed, float32)
    returns (B, output_size) logits in `out_dtype` (bf16 default; pass
            jnp.float32 for exact-f32 logits).
    """
    B = x.shape[0]
    tile = _pick_tile(B, max_batch_tile)
    return _forward_impl(
        x,
        params["w1"], params["b1"],
        params["w2"], params["b2"],
        params["w3"], params["b3"],
        batch_tile=tile,
        out_dtype=out_dtype,
    )


def init_params(key, input_size, hidden_size, output_size):
    """Deterministic PyTorch-style (uniform +/- 1/sqrt(fan_in)) init."""
    ks = jax.random.split(key, 6)

    def linear(kw, kb, fan_in, fan_out):
        bound = 1.0 / jnp.sqrt(fan_in)
        w = jax.random.uniform(kw, (fan_in, fan_out), jnp.float32, -bound, bound)
        b = jax.random.uniform(kb, (1, fan_out), jnp.float32, -bound, bound)
        return w, b

    w1, b1 = linear(ks[0], ks[1], input_size, hidden_size)
    w2, b2 = linear(ks[2], ks[3], hidden_size, hidden_size)
    w3, b3 = linear(ks[4], ks[5], hidden_size, output_size)
    return {"w1": w1, "b1": b1, "w2": w2, "b2": b2, "w3": w3, "b3": b3}


def _reference_forward(x, p):
    # Pure-JAX reference matching the kernel's internal numerics:
    # bf16 matmul operands, f32 accumulation, f32 bias/ReLU, f32 result.
    bf = jnp.bfloat16
    h1 = jnp.maximum(
        jnp.dot(x.astype(bf), p["w1"].astype(bf),
                preferred_element_type=jnp.float32) + p["b1"], 0.0)
    h2 = jnp.maximum(
        jnp.dot(h1.astype(bf), p["w2"].astype(bf),
                preferred_element_type=jnp.float32) + p["b2"], 0.0)
    return jnp.dot(h2.astype(bf), p["w3"].astype(bf),
                   preferred_element_type=jnp.float32) + p["b3"]


if __name__ == "__main__":
    # Shapes consistent with the module: 21 hand landmarks * 2 coords as
    # input features, hidden_size=64, 24 sign-language classes.
    input_size = 42
    hidden_size = 64
    output_size = 24

    key = jax.random.PRNGKey(0)
    k_x, k_p, k_x2 = jax.random.split(key, 3)
    params = init_params(k_p, input_size, hidden_size, output_size)

    # Case 1: tiny batch (single full-batch block, bf16 logits).
    batch = 8
    x = jax.random.normal(k_x, (batch, input_size), jnp.float32)
    out = jax.block_until_ready(sign_language_nn_forward(x, params))
    ref = _reference_forward(x, params)
    assert out.shape == (batch, output_size)
    assert out.dtype == jnp.bfloat16
    assert jnp.allclose(out.astype(jnp.float32), ref, atol=3e-2, rtol=3e-2), \
        "mismatch vs reference (B=8, bf16 out)"

    # Case 2: batch that is not a multiple of the tile -> multi-step parallel
    # grid with a ragged (masked-writeback) last block.
    batch2 = 137
    x2 = jax.random.normal(k_x2, (batch2, input_size), jnp.float32)
    out2 = jax.block_until_ready(sign_language_nn_forward(x2, params))
    ref2 = _reference_forward(x2, params)
    assert out2.shape == (batch2, output_size)
    assert jnp.allclose(out2.astype(jnp.float32), ref2, atol=3e-2, rtol=3e-2), \
        "mismatch vs reference (B=137, ragged grid)"

    # Case 3: exact-f32 logits path (dtype-compatible with the PyTorch module).
    out3 = jax.block_until_ready(
        sign_language_nn_forward(x, params, out_dtype=jnp.float32))
    assert out3.dtype == jnp.float32
    assert jnp.allclose(out3, ref, atol=2e-3, rtol=2e-3), \
        "mismatch vs reference (B=8, f32 out)"

    print("KERNEL_OK")
</pallas_src>

<mosaic_0001>
module attributes {stable_mosaic.version = 11 : i64} {
  func.func @_mlp_kernel(%arg0: i32, %arg1: memref<8x42xf32, #tpu.memory_space<vmem>>, %arg2: memref<42x64xf32, #tpu.memory_space<vmem>>, %arg3: memref<1x64xf32, #tpu.memory_space<vmem>>, %arg4: memref<64x64xf32, #tpu.memory_space<vmem>>, %arg5: memref<1x64xf32, #tpu.memory_space<vmem>>, %arg6: memref<64x24xf32, #tpu.memory_space<vmem>>, %arg7: memref<1x24xf32, #tpu.memory_space<vmem>>, %arg8: memref<8x24xbf16, #tpu.memory_space<vmem>>) attributes {dimension_semantics = [#tpu.dimension_semantics<parallel>], iteration_bounds = array<i64: 1>, scalar_prefetch = 0 : i64, scratch_operands = 0 : i64, tpu.core_type = #tpu.core_type<tc>, window_params = [{transform_indices = @transform_0, window_bounds = array<i64: 8, 42>}, {pipeline_mode = #tpu.pipeline_mode<synchronous>, transform_indices = @transform_1, window_bounds = array<i64: 42, 64>}, {pipeline_mode = #tpu.pipeline_mode<synchronous>, transform_indices = @transform_2, window_bounds = array<i64: 1, 64>}, {pipeline_mode = #tpu.pipeline_mode<synchronous>, transform_indices = @transform_3, window_bounds = array<i64: 64, 64>}, {pipeline_mode = #tpu.pipeline_mode<synchronous>, transform_indices = @transform_4, window_bounds = array<i64: 1, 64>}, {pipeline_mode = #tpu.pipeline_mode<synchronous>, transform_indices = @transform_5, window_bounds = array<i64: 64, 24>}, {pipeline_mode = #tpu.pipeline_mode<synchronous>, transform_indices = @transform_6, window_bounds = array<i64: 1, 24>}, {transform_indices = @transform_7, window_bounds = array<i64: 8, 24>}]} {
    %c0 = arith.constant 0 : index
    %c0_0 = arith.constant 0 : index
    %0 = vector.load %arg1[%c0, %c0_0] : memref<8x42xf32, #tpu.memory_space<vmem>>, vector<8x42xf32>
    %1 = arith.truncf %0 : vector<8x42xf32> to vector<8x42xbf16>
    %c0_1 = arith.constant 0 : index
    %c0_2 = arith.constant 0 : index
    %2 = vector.load %arg2[%c0_1, %c0_2] : memref<42x64xf32, #tpu.memory_space<vmem>>, vector<42x64xf32>
    %3 = arith.truncf %2 : vector<42x64xf32> to vector<42x64xbf16>
    %cst = arith.constant dense<0.000000e+00> : vector<8x64xf32>
    %4 = tpu.matmul %1, %3, %cst {dimension_numbers = #tpu.dot_dimension_numbers<[1], [0], [0], [1], [0, 0, 1, 1], [], []>} : vector<8x42xbf16>, vector<42x64xbf16>, vector<8x64xf32> -> vector<8x64xf32>
    %c0_3 = arith.constant 0 : index
    %c0_4 = arith.constant 0 : index
    %5 = vector.load %arg3[%c0_3, %c0_4] : memref<1x64xf32, #tpu.memory_space<vmem>>, vector<1x64xf32>
    %6 = vector.broadcast %5 : vector<1x64xf32> to vector<8x64xf32>
    %7 = arith.addf %4, %6 : vector<8x64xf32>
    %cst_5 = arith.constant 0.000000e+00 : f32
    %8 = vector.broadcast %cst_5 : f32 to vector<8x64xf32>
    %9 = arith.maximumf %7, %8 : vector<8x64xf32>
    %10 = arith.truncf %9 : vector<8x64xf32> to vector<8x64xbf16>
    %c0_6 = arith.constant 0 : index
    %c0_7 = arith.constant 0 : index
    %11 = vector.load %arg4[%c0_6, %c0_7] : memref<64x64xf32, #tpu.memory_space<vmem>>, vector<64x64xf32>
    %12 = arith.truncf %11 : vector<64x64xf32> to vector<64x64xbf16>
    %cst_8 = arith.constant dense<0.000000e+00> : vector<8x64xf32>
    %13 = tpu.matmul %10, %12, %cst_8 {dimension_numbers = #tpu.dot_dimension_numbers<[1], [0], [0], [1], [0, 0, 1, 1], [], []>} : vector<8x64xbf16>, vector<64x64xbf16>, vector<8x64xf32> -> vector<8x64xf32>
    %c0_9 = arith.constant 0 : index
    %c0_10 = arith.constant 0 : index
    %14 = vector.load %arg5[%c0_9, %c0_10] : memref<1x64xf32, #tpu.memory_space<vmem>>, vector<1x64xf32>
    %15 = vector.broadcast %14 : vector<1x64xf32> to vector<8x64xf32>
    %16 = arith.addf %13, %15 : vector<8x64xf32>
    %cst_11 = arith.constant 0.000000e+00 : f32
    %17 = vector.broadcast %cst_11 : f32 to vector<8x64xf32>
    %18 = arith.maximumf %16, %17 : vector<8x64xf32>
    %19 = arith.truncf %18 : vector<8x64xf32> to vector<8x64xbf16>
    %c0_12 = arith.constant 0 : index
    %c0_13 = arith.constant 0 : index
    %20 = vector.load %arg6[%c0_12, %c0_13] : memref<64x24xf32, #tpu.memory_space<vmem>>, vector<64x24xf32>
    %21 = arith.truncf %20 : vector<64x24xf32> to vector<64x24xbf16>
    %cst_14 = arith.constant dense<0.000000e+00> : vector<8x24xf32>
    %22 = tpu.matmul %19, %21, %cst_14 {dimension_numbers = #tpu.dot_dimension_numbers<[1], [0], [0], [1], [0, 0, 1, 1], [], []>} : vector<8x64xbf16>, vector<64x24xbf16>, vector<8x24xf32> -> vector<8x24xf32>
    %c0_15 = arith.constant 0 : index
    %c0_16 = arith.constant 0 : index
    %23 = vector.load %arg7[%c0_15, %c0_16] : memref<1x24xf32, #tpu.memory_space<vmem>>, vector<1x24xf32>
    %24 = vector.broadcast %23 : vector<1x24xf32> to vector<8x24xf32>
    %25 = arith.addf %22, %24 : vector<8x24xf32>
    %26 = arith.truncf %25 : vector<8x24xf32> to vector<8x24xbf16>
    %c0_17 = arith.constant 0 : index
    %c0_18 = arith.constant 0 : index
    %27 = vector.load %arg8[%c0_17, %c0_18] : memref<8x24xbf16, #tpu.memory_space<vmem>>, vector<8x24xbf16>
    tpu.vector_store %arg8[%c0_17, %c0_18], %26 {strides = array<i32>} : memref<8x24xbf16, #tpu.memory_space<vmem>>, vector<8x24xbf16>,
    return
  }
  func.func @transform_0(%arg0: i32) -> (i32, i32) {
    %c0_i32 = arith.constant 0 : i32
    %c0_i32_0 = arith.constant 0 : i32
    return %arg0, %c0_i32 : i32, i32
  }
  func.func @transform_1(%arg0: i32) -> (i32, i32) {
    %c0_i32 = arith.constant 0 : i32
    %c0_i32_0 = arith.constant 0 : i32
    %c0_i32_1 = arith.constant 0 : i32
    return %c0_i32, %c0_i32_0 : i32, i32
  }
  func.func @transform_2(%arg0: i32) -> (i32, i32) {
    %c0_i32 = arith.constant 0 : i32
    %c0_i32_0 = arith.constant 0 : i32
    %c0_i32_1 = arith.constant 0 : i32
    return %c0_i32, %c0_i32_0 : i32, i32
  }
  func.func @transform_3(%arg0: i32) -> (i32, i32) {
    %c0_i32 = arith.constant 0 : i32
    %c0_i32_0 = arith.constant 0 : i32
    %c0_i32_1 = arith.constant 0 : i32
    return %c0_i32, %c0_i32_0 : i32, i32
  }
  func.func @transform_4(%arg0: i32) -> (i32, i32) {
    %c0_i32 = arith.constant 0 : i32
    %c0_i32_0 = arith.constant 0 : i32
    %c0_i32_1 = arith.constant 0 : i32
    return %c0_i32, %c0_i32_0 : i32, i32
  }
  func.func @transform_5(%arg0: i32) -> (i32, i32) {
    %c0_i32 = arith.constant 0 : i32
    %c0_i32_0 = arith.constant 0 : i32
    %c0_i32_1 = arith.constant 0 : i32
    return %c0_i32, %c0_i32_0 : i32, i32
  }
  func.func @transform_6(%arg0: i32) -> (i32, i32) {
    %c0_i32 = arith.constant 0 : i32
    %c0_i32_0 = arith.constant 0 : i32
    %c0_i32_1 = arith.constant 0 : i32
    return %c0_i32, %c0_i32_0 : i32, i32
  }
  func.func @transform_7(%arg0: i32) -> (i32, i32) {
    %c0_i32 = arith.constant 0 : i32
    %c0_i32_0 = arith.constant 0 : i32
    return %arg0, %c0_i32 : i32, i32
  }
}

</mosaic_0001>

<llo_original>
// kernel: _forward_impl.1
$region0: #{_forward_impl.1}
  #allocation0 [shape = 'u32[]', space=smem, size = 0x4, offset = 0x4, fixed_abs, tag = 'smem constant byte address 0x4 - core index']
  #allocation1 [shape = 'u32[72,128]{1,0:T(1,128)}', space=vmem, size = 0x9000, scoped, tag = 'internal scratch']
  %s0 = inlined_call_operand.vmem [shape: f32[8,42], index: 0, kind: input, shape index: {}]
  %s1 = inlined_call_operand.hbm [shape: f32[42,64], index: 1, kind: input, shape index: {}]
  %s2 = inlined_call_operand.vmem [shape: f32[1,64], index: 2, kind: input, shape index: {}]
  %s3 = inlined_call_operand.vmem [shape: f32[64,64], index: 3, kind: input, shape index: {}]
  %s4 = inlined_call_operand.vmem [shape: f32[1,64], index: 4, kind: input, shape index: {}]
  %s5 = inlined_call_operand.vmem [shape: f32[64,24], index: 5, kind: input, shape index: {}]
  %s6 = inlined_call_operand.vmem [shape: f32[1,24], index: 6, kind: input, shape index: {}]
  %s7 = inlined_call_operand.hbm [shape: bf16[8,24], index: 7, kind: output, shape index: {}]
  %s8 = sld [smem:[#allocation0]]
  $region42: #{_forward_impl.1} parent=0
    _
  %s10 = ssub.s32 1, %s8
  %s11 = scalar_select 0, %s10, %s8
  $region1: #{_forward_impl.1} parent=0
    #allocation2 [shape = 'u8[24576]{0}', space=vmem, size = 0x6000, scoped, tag = 'input window, operand 1, single buffered']
    #allocation3 [shape = 's32[1]{0}', space=sflag, size = 0x4, scoped, tag = 'scoped memory for _forward_impl.1']
    #allocation4 [shape = 's32[1]{0}', space=sflag, size = 0x4, scoped, tag = 'scoped memory for _forward_impl.1']
    #allocation5 [shape = 'u8[2048]{0}', space=vmem, size = 0x800, scoped, tag = 'output window, operand 0, single buffered']
    %12 = vsyncpa [#allocation3], 0
    %13 = vsyncpa [#allocation4], 0
    // Predicated region
    $region2: #{_forward_impl.1} parent=1 // pred_check
      _
    $region3: #{_forward_impl.1} parent=1 // pred_check_branch
      %15 = sbr.rel (0) target = $region5
    $region4: #{_forward_impl.1} parent=1 // pred_region
      _
    $region5: #{_forward_impl.1} parent=1 // pred_fallthru
      _
    // Predicated region
    $region6: #{_forward_impl.1} parent=1 // pred_check
      _
    $region7: #{_forward_impl.1} parent=1 // pred_check_branch
      %17 = sbr.rel (0) target = $region9
    $region8: #{_forward_impl.1} parent=1 // pred_region
      %19 = vsyncadd [#allocation3], 0
      %s20 = sshll.u32 %s1, 4
      %s21 = int_to_ptr.hbm [resolvable:$true] %s20
      %s22 = sshll.u32 [#allocation2], 4
      %s23 = int_to_ptr.vmem [resolvable:$true] %s22
      %28 = dma.hbm_to_vmem [thread:$0]  %s21, 768, %s23, [#allocation3], 128, 128, 8
    $region9: #{_forward_impl.1} parent=1 // pred_fallthru
      _
    // Predicated region
    $region10: #{_forward_impl.1} parent=1 // pred_check
      _
    $region11: #{_forward_impl.1} parent=1 // pred_check_branch
      %30 = sbr.rel (0) target = $region13
    $region12: #{_forward_impl.1} parent=1 // pred_region
      _
    $region13: #{_forward_impl.1} parent=1 // pred_fallthru
      _
    // Predicated region
    $region14: #{_forward_impl.1} parent=1 // pred_check
      _
    $region15: #{_forward_impl.1} parent=1 // pred_check_branch
      %32 = sbr.rel (0) target = $region17
    $region16: #{_forward_impl.1} parent=1 // pred_region
      _
    $region17: #{_forward_impl.1} parent=1 // pred_fallthru
      _
    // Predicated region
    $region18: #{_forward_impl.1} parent=1 // pred_check
      _
    $region19: #{_forward_impl.1} parent=1 // pred_check_branch
      %34 = sbr.rel (0) target = $region21
    $region20: #{_forward_impl.1} parent=1 // pred_region
      _
    $region21: #{_forward_impl.1} parent=1 // pred_fallthru
      _
    // Predicated region
    $region22: #{_forward_impl.1} parent=1 // pred_check
      _
    $region23: #{_forward_impl.1} parent=1 // pred_check_branch
      %36 = sbr.rel (0) target = $region25
    $region24: #{_forward_impl.1} parent=1 // pred_region
      _
    $region25: #{_forward_impl.1} parent=1 // pred_fallthru
      _
    // Predicated region
    $region26: #{_forward_impl.1} parent=1 // pred_check
      _
    $region27: #{_forward_impl.1} parent=1 // pred_check_branch
      %38 = sbr.rel (0) target = $region29
    $region28: #{_forward_impl.1} parent=1 // pred_region
      _
    $region29: #{_forward_impl.1} parent=1 // pred_fallthru
      _
    // Predicated region
    $region30: #{_forward_impl.1} parent=1 // pred_check
      _
    $region31: #{_forward_impl.1} parent=1 // pred_check_branch
      %40 = sbr.rel (0) target = $region33
    $region32: #{_forward_impl.1} parent=1 // pred_region
      %42 = dma.done [#allocation3], 768
    $region33: #{_forward_impl.1} parent=1 // pred_fallthru
      _
    %v44 = vld [vmem:[%s0] sm:$0xff]
    %v45 = vpack.c.bf16 %v44, %v44
    %v46 = vld [vmem:[#allocation2] sm:$0xff]
    %v47 = vld [vmem:[#allocation2 + $0x8] sm:$0xff]
    %v48 = vld [vmem:[#allocation2 + $0x10] sm:$0xff]
    %v49 = vld [vmem:[#allocation2 + $0x18] sm:$0xff]
    %v50 = vld [vmem:[#allocation2 + $0x20] sm:$0xff]
    %v51 = vld [vmem:[#allocation2 + $0x28] sm:$0x3]
    %v52 = vpack.c.bf16 %v47, %v46
    %v53 = vpack.c.bf16 %v49, %v48
    %v54 = vpack.c.bf16 %v51, %v50
    %v55 = vld [vmem:[%s2] sm:$0x1]
    %v57 = vperm.slane %v55, 0
    %vm59 = vcmask 343040
    %v61 = vsel %vm59, %v45, 0
    %vm63 = vcmask 1044480
    %v65 = vsel %vm63, %v54, 0
    %67 = vmatpush.bf16.msra.mxu0 0
    %68 = vmatpush.bf16.msra.mxu0 0
    %69 = vmatpush.bf16.msra.mxu0 0
    %70 = vmatpush.bf16.msra.mxu0 0
    %71 = vmatpush.bf16.msra.mxu0 0
    %72 = vmatpush.bf16.msra.mxu0 %v65
    %73 = vmatpush.bf16.msra.mxu0 %v53
    %74 = vmatpush.bf16.msra.mxu0 %v52
    %75 = vmatmul.bf16.gmra.mxu0 %v61
    %v76 = vpop.f32.mrf.mxu0
    %v77 = vadd.f32 %v57, %v76
    %v78 = vpop.f32.mrf.mxu0
    %79 = vdwg.mxu0
    %v80 = vmax.f32 %v77, 0.0
    %v81 = vpack.c.bf16 %v80, %v80
    %v82 = vld [vmem:[%s3] sm:$0xff]
    %v83 = vld [vmem:[%s3 + $0x8] sm:$0xff]
    %v84 = vld [vmem:[%s3 + $0x10] sm:$0xff]
    %v85 = vld [vmem:[%s3 + $0x18] sm:$0xff]
    %v86 = vld [vmem:[%s3 + $0x20] sm:$0xff]
    %v87 = vld [vmem:[%s3 + $0x28] sm:$0xff]
    %v88 = vld [vmem:[%s3 + $0x30] sm:$0xff]
    %v89 = vld [vmem:[%s3 + $0x38] sm:$0xff]
    %v90 = vpack.c.bf16 %v83, %v82
    %v91 = vpack.c.bf16 %v85, %v84
    %v92 = vpack.c.bf16 %v87, %v86
    %v93 = vpack.c.bf16 %v89, %v88
    %v94 = vld [vmem:[%s4] sm:$0x1]
    %v96 = vperm.slane %v94, 0
    %vm98 = vcmask 523264
    %v100 = vsel %vm98, %v81, 0
    %102 = vmatpush.bf16.msra.mxu0 0
    %103 = vmatpush.bf16.msra.mxu0 0
    %104 = vmatpush.bf16.msra.mxu0 0
    %105 = vmatpush.bf16.msra.mxu0 0
    %106 = vmatpush.bf16.msra.mxu0 %v93
    %107 = vmatpush.bf16.msra.mxu0 %v92
    %108 = vmatpush.bf16.msra.mxu0 %v91
    %109 = vmatpush.bf16.msra.mxu0 %v90
    %110 = vmatmul.bf16.gmra.mxu0 %v100
    %v111 = vpop.f32.mrf.mxu0
    %v112 = vadd.f32 %v96, %v111
    %v113 = vpop.f32.mrf.mxu0
    %114 = vdwg.mxu0
    %v115 = vmax.f32 %v112, 0.0
    %v116 = vpack.c.bf16 %v115, %v115
    %v117 = vld [vmem:[%s5] sm:$0xff]
    %v118 = vld [vmem:[%s5 + $0x8] sm:$0xff]
    %v119 = vld [vmem:[%s5 + $0x10] sm:$0xff]
    %v120 = vld [vmem:[%s5 + $0x18] sm:$0xff]
    %v121 = vld [vmem:[%s5 + $0x20] sm:$0xff]
    %v122 = vld [vmem:[%s5 + $0x28] sm:$0xff]
    %v123 = vld [vmem:[%s5 + $0x30] sm:$0xff]
    %v124 = vld [vmem:[%s5 + $0x38] sm:$0xff]
    %v125 = vpack.c.bf16 %v118, %v117
    %v126 = vpack.c.bf16 %v120, %v119
    %v127 = vpack.c.bf16 %v122, %v121
    %v128 = vpack.c.bf16 %v124, %v123
    %v129 = vld [vmem:[%s6] sm:$0x1]
    %v131 = vperm.slane %v129, 0
    %v134 = vsel %vm98, %v116, 0
    %136 = vmatpush.bf16.msra.mxu0 0
    %137 = vmatpush.bf16.msra.mxu0 0
    %138 = vmatpush.bf16.msra.mxu0 0
    %139 = vmatpush.bf16.msra.mxu0 0
    %140 = vmatpush.bf16.msra.mxu0 %v128
    %141 = vmatpush.bf16.msra.mxu0 %v127
    %142 = vmatpush.bf16.msra.mxu0 %v126
    %143 = vmatpush.bf16.msra.mxu0 %v125
    %144 = vmatmul.bf16.gmra.mxu0 %v134
    %v145 = vpop.f32.mrf.mxu0
    %v146 = vadd.f32 %v131, %v145
    %v147 = vpop.f32.mrf.mxu0
    %148 = vdwg.mxu0
    %v149 = vpack.c.bf16 %v146, %v146
    %vm150 = vcmask 191488
    %151 = vst.msk [vmem:[#allocation5] sm:$0xf] %vm150, %v149
    // Predicated region
    $region34: #{_forward_impl.1} parent=1 // pred_check
      _
    $region35: #{_forward_impl.1} parent=1 // pred_check_branch
      %153 = sbr.rel (0) target = $region37
    $region36: #{_forward_impl.1} parent=1 // pred_region
      %155 = vsyncadd [#allocation4], 0
      %s157 = sshll.u32 [#allocation5], 4
      %s158 = int_to_ptr.vmem [resolvable:$true] %s157
      %s159 = sshll.u32 %s7, 4
      %s160 = int_to_ptr.hbm [resolvable:$true] %s159
      %162 = dma.vmem_to_hbm [thread:$0]  %s158, 64, %s160, [#allocation4]
    $region37: #{_forward_impl.1} parent=1 // pred_fallthru
      _
    // Predicated region
    $region38: #{_forward_impl.1} parent=1 // pred_check
      _
    $region39: #{_forward_impl.1} parent=1 // pred_check_branch
      %164 = sbr.rel (0) target = $region41
    $region40: #{_forward_impl.1} parent=1 // pred_region
      %166 = dma.done [#allocation4], 64
    $region41: #{_forward_impl.1} parent=1 // pred_fallthru
      _
    %167 = vsyncpa [#allocation3], 1
    %168 = vsyncpa [#allocation4], 1

</llo_original>
